<compile_context>
chip_gen: v5e
topology: v5e:2x2
jax: 0.10.0
libtpu: 0.0.40
codegen_flags: <defaults>
</compile_context>

<pallas_src>
import jax
import jax.numpy as jnp
from jax.experimental import pallas as pl
from jax.experimental.pallas import tpu as pltpu


def _round_up(v, m):
    return (v + m - 1) // m * m


def _tpu_generation():
    """Best-effort TPU generation detection (5 / 6 / 7). Defaults to 6."""
    try:
        kind = jax.devices()[0].device_kind.lower()
    except Exception:  # pragma: no cover - defensive
        return 6
    if "v5" in kind:
        return 5
    if "v6" in kind:
        return 6
    if "7" in kind:
        return 7
    return 6


# ---------------------------------------------------------------------------
# Tile planning (generation aware)
# ---------------------------------------------------------------------------
def _plan_tiles(N, F, compute_dtype, out_dtype):
    gen = _tpu_generation()
    if gen == 5:
        # v5e: lowest HBM BW, 16 MiB scoped-VMEM default (128 MiB physical).
        tm_cap, tk_cap, tn_cap, vmem_cap = 512, 1024, 512, 100 * (1 << 20)
    elif gen == 7:
        # v7x: 3.2 TB/s HBM but only 64 MiB VMEM per TensorCore.
        tm_cap, tk_cap, tn_cap, vmem_cap = 1024, 1024, 512, 56 * (1 << 20)
    else:
        # v6e and default.
        tm_cap, tk_cap, tn_cap, vmem_cap = 1024, 1024, 512, 100 * (1 << 20)

    # Lane-dense, MXU-friendly tiles; shrink to the (128-rounded) problem size
    # for small graphs so padding stays cheap.
    TM = min(tm_cap, _round_up(N, 128))
    TK = min(tk_cap, _round_up(N, 128))
    # TN covers the whole padded feature dim when possible (j axis -> 1) so
    # the (N, N) A matrix is streamed from HBM exactly once.
    TN = min(tn_cap, _round_up(F, 128))

    Mp = _round_up(N, TM)
    if gen == 7 and Mp // TM < 2 and N > 256:
        # Two TensorCores per chip: make sure the "parallel" i axis has at
        # least two blocks so neither core idles.
        TM = max(256, _round_up(Mp // 2, 128))
        Mp = _round_up(N, TM)
    Kp = _round_up(N, TK)
    Fp = _round_up(F, TN)

    in_itemsize = jnp.dtype(compute_dtype).itemsize
    out_itemsize = jnp.dtype(out_dtype).itemsize
    accum_in_out = jnp.dtype(out_dtype) == jnp.dtype(jnp.float32)

    vmem_bytes = (
        2 * TM * TK * in_itemsize       # A tiles (double buffered)
        + 2 * TK * TN * in_itemsize     # x tiles (double buffered)
        + 2 * TM * TN * out_itemsize    # out tiles (double buffered)
        + (0 if accum_in_out else TM * TN * 4)  # f32 accumulator scratch
        + (8 << 20)                     # headroom for compiler scratch
    )
    vmem_limit = int(min(vmem_cap, vmem_bytes))

    return dict(TM=TM, TK=TK, TN=TN, Mp=Mp, Kp=Kp, Fp=Fp,
                vmem_limit=vmem_limit, accum_in_out=accum_in_out)


# ---------------------------------------------------------------------------
# Pallas kernels: tiled matmul  out = A_hat @ x  with f32 accumulation
# ---------------------------------------------------------------------------
def _spmm_kernel_accum_out(a_ref, x_ref, o_ref):
    # Output block is resident across the reduction axis (its index map
    # ignores k), so accumulate directly into it (f32 output) — no scratch,
    # no finalize copy.
    @pl.when(pl.program_id(2) == 0)
    def _init():
        o_ref[...] = jnp.zeros_like(o_ref)

    o_ref[...] += jnp.dot(
        a_ref[...], x_ref[...], preferred_element_type=jnp.float32
    )


def _spmm_kernel_scratch(a_ref, x_ref, o_ref, acc_ref):
    # Fallback for non-f32 output dtypes: classic f32 VMEM accumulator.
    @pl.when(pl.program_id(2) == 0)
    def _init():
        acc_ref[...] = jnp.zeros_like(acc_ref)

    acc_ref[...] += jnp.dot(
        a_ref[...], x_ref[...], preferred_element_type=jnp.float32
    )

    @pl.when(pl.program_id(2) == pl.num_programs(2) - 1)
    def _finalize():
        o_ref[...] = acc_ref[...].astype(o_ref.dtype)


def _pallas_matmul_padded(a_p, x_p, out_dtype, plan):
    """out = a_p @ x_p for already-padded, already-cast operands."""
    Mp, Kp = a_p.shape
    Kp2, Fp = x_p.shape
    assert Kp == Kp2
    TM, TK, TN = plan["TM"], plan["TK"], plan["TN"]
    assert Mp % TM == 0 and Kp % TK == 0 and Fp % TN == 0

    grid = (Mp // TM, Fp // TN, Kp // TK)

    in_itemsize = a_p.dtype.itemsize
    out_itemsize = jnp.dtype(out_dtype).itemsize

    # bytes_accessed counts re-reads exactly: A is re-read once per j block
    # (1 with TN == Fp), x once per i block, output written once.
    cost = pl.CostEstimate(
        flops=2 * Mp * Kp * Fp,
        transcendentals=0,
        bytes_accessed=(
            Mp * Kp * in_itemsize * (Fp // TN)
            + Kp * Fp * in_itemsize * (Mp // TM)
            + Mp * Fp * out_itemsize
        ),
    )

    if plan["accum_in_out"]:
        kernel = _spmm_kernel_accum_out
        scratch_shapes = []
    else:
        kernel = _spmm_kernel_scratch
        scratch_shapes = [pltpu.VMEM((TM, TN), jnp.float32)]

    return pl.pallas_call(
        kernel,
        out_shape=jax.ShapeDtypeStruct((Mp, Fp), out_dtype),
        grid_spec=pltpu.PrefetchScalarGridSpec(
            num_scalar_prefetch=0,
            grid=grid,
            in_specs=[
                pl.BlockSpec((TM, TK), lambda i, j, k: (i, k)),
                pl.BlockSpec((TK, TN), lambda i, j, k: (k, j)),
            ],
            out_specs=pl.BlockSpec((TM, TN), lambda i, j, k: (i, j)),
            scratch_shapes=scratch_shapes,
        ),
        compiler_params=pltpu.CompilerParams(
            dimension_semantics=("parallel", "parallel", "arbitrary"),
            vmem_limit_bytes=plan["vmem_limit"],
        ),
        cost_estimate=cost,
    )(a_p, x_p)


# ---------------------------------------------------------------------------
# GCNProp forward (glue in JAX + Pallas SpMM)
# ---------------------------------------------------------------------------
def gcn_prop_forward(x, edge_index, edge_attr=None, improved=False,
                     compute_dtype=jnp.bfloat16):
    """JAX/Pallas equivalent of GCNProp.forward.

    x:          (N, F) float32 node features
    edge_index: (2, E) int32    [row; col]
    edge_attr:  (E,)   float32 or None
    """
    N, F = x.shape
    E = edge_index.shape[1]
    out_dtype = x.dtype

    row_e = edge_index[0].astype(jnp.int32)
    col_e = edge_index[1].astype(jnp.int32)

    if edge_attr is None:
        edge_attr = jnp.ones((E,), dtype=x.dtype)

    # remove_self_loops: instead of dropping (dynamic shape), zero their
    # weight — identical contribution to deg and to spmm.
    not_self = (row_e != col_e).astype(x.dtype)
    edge_attr = edge_attr * not_self

    # add_self_loops + loop_value
    loop_idx = jnp.arange(N, dtype=jnp.int32)
    row = jnp.concatenate([row_e, loop_idx], axis=0)
    col = jnp.concatenate([col_e, loop_idx], axis=0)
    loop_value = jnp.full((N,), 2.0 if improved else 1.0, dtype=x.dtype)
    attr = jnp.concatenate([edge_attr, loop_value], axis=0)

    # deg = scatter_add(attr, row); deg^-0.5 with inf -> 0
    deg = jax.ops.segment_sum(attr, row, num_segments=N)
    deg_inv_sqrt = jnp.where(deg == 0.0, 0.0, deg ** -0.5)

    # normalized edge weights
    attr = deg_inv_sqrt[row] * attr * deg_inv_sqrt[col]

    # Plan tiles / padded shapes once, then scatter straight into the padded
    # adjacency (f32 so duplicate edges accumulate exactly) and cast a single
    # time — no separate pad pass over the N^2 matrix.
    plan = _plan_tiles(N, F, compute_dtype, out_dtype)
    Mp, Kp, Fp = plan["Mp"], plan["Kp"], plan["Fp"]

    a_hat = (
        jnp.zeros((Mp, Kp), dtype=jnp.float32)
        .at[row, col]
        .add(attr.astype(jnp.float32))
        .astype(compute_dtype)
    )
    x_p = jnp.pad(x, ((0, Kp - N), (0, Fp - F))).astype(compute_dtype)

    # Hot path: out = A_hat @ x  (tiled Pallas kernel, MXU).
    out_p = _pallas_matmul_padded(a_hat, x_p, out_dtype, plan)
    return out_p[:N, :F]


# ---------------------------------------------------------------------------
# Reference (pure jnp) for correctness check
# ---------------------------------------------------------------------------
def _reference(x, edge_index, edge_attr=None, improved=False):
    N = x.shape[0]
    E = edge_index.shape[1]
    row_e, col_e = edge_index[0], edge_index[1]
    if edge_attr is None:
        edge_attr = jnp.ones((E,), dtype=x.dtype)
    edge_attr = edge_attr * (row_e != col_e).astype(x.dtype)
    loop_idx = jnp.arange(N, dtype=edge_index.dtype)
    row = jnp.concatenate([row_e, loop_idx])
    col = jnp.concatenate([col_e, loop_idx])
    attr = jnp.concatenate(
        [edge_attr, jnp.full((N,), 2.0 if improved else 1.0, dtype=x.dtype)]
    )
    deg = jax.ops.segment_sum(attr, row, num_segments=N)
    dis = jnp.where(deg == 0.0, 0.0, deg ** -0.5)
    attr = dis[row] * attr * dis[col]
    out = jax.ops.segment_sum(attr[:, None] * x[col], row, num_segments=N)
    return out


if __name__ == "__main__":
    key = jax.random.PRNGKey(0)
    k_x, k_r, k_c = jax.random.split(key, 3)

    N, F, E = 16, 32, 48  # small graph: 16 nodes, 32 features, 48 edges

    x = jax.random.normal(k_x, (N, F), dtype=jnp.float32)
    row = jax.random.randint(k_r, (E,), 0, N, dtype=jnp.int32)
    col = jax.random.randint(k_c, (E,), 0, N, dtype=jnp.int32)
    edge_index = jnp.stack([row, col], axis=0)  # (2, E); may contain self loops

    ref = _reference(x, edge_index, edge_attr=None, improved=False)

    # Exact path (f32 on the MXU) — tight tolerance check.
    out_f32 = gcn_prop_forward(
        x, edge_index, edge_attr=None, improved=False, compute_dtype=jnp.float32
    )
    out_f32 = jax.block_until_ready(out_f32)
    assert out_f32.shape == (N, F)
    assert jnp.allclose(out_f32, ref, atol=1e-4, rtol=1e-4), "f32 mismatch vs reference"

    # Fast path (default): bf16 operands on the MXU, f32 accumulation.
    out_bf16 = gcn_prop_forward(x, edge_index, edge_attr=None, improved=False)
    out_bf16 = jax.block_until_ready(out_bf16)
    assert out_bf16.shape == (N, F)
    assert jnp.allclose(out_bf16, ref, atol=3e-2, rtol=3e-2), "bf16 mismatch vs reference"

    print("KERNEL_OK")
</pallas_src>

<mosaic_0001>
module attributes {stable_mosaic.version = 11 : i64} {
  func.func @_spmm_kernel_accum_out(%arg0: i32, %arg1: i32, %arg2: i32, %arg3: memref<128x128xf32, #tpu.memory_space<vmem>>, %arg4: memref<128x128xf32, #tpu.memory_space<vmem>>, %arg5: memref<128x128xf32, #tpu.memory_space<vmem>>) attributes {dimension_semantics = [#tpu.dimension_semantics<parallel>, #tpu.dimension_semantics<parallel>, #tpu.dimension_semantics<arbitrary>], iteration_bounds = array<i64: 1, 1, 1>, scalar_prefetch = 0 : i64, scratch_operands = 0 : i64, tpu.core_type = #tpu.core_type<tc>, window_params = [{transform_indices = @transform_0, window_bounds = array<i64: 128, 128>}, {transform_indices = @transform_1, window_bounds = array<i64: 128, 128>}, {transform_indices = @transform_2, window_bounds = array<i64: 128, 128>}]} {
    %c0_i32 = arith.constant 0 : i32
    %0 = arith.cmpi eq, %arg2, %c0_i32 : i32
    %1 = arith.extui %0 : i1 to i32
    %c0_i32_0 = arith.constant 0 : i32
    %2 = arith.cmpi ne, %1, %c0_i32_0 : i32
    scf.if %2 {
      %cst_8 = arith.constant 0.000000e+00 : f32
      %9 = vector.broadcast %cst_8 : f32 to vector<128x128xf32>
      %c0_9 = arith.constant 0 : index
      %c0_10 = arith.constant 0 : index
      %10 = vector.load %arg5[%c0_9, %c0_10] : memref<128x128xf32, #tpu.memory_space<vmem>>, vector<128x128xf32>
      tpu.vector_store %arg5[%c0_9, %c0_10], %9 {strides = array<i32>} : memref<128x128xf32, #tpu.memory_space<vmem>>, vector<128x128xf32>,
    } else {
    }
    %c0 = arith.constant 0 : index
    %c0_1 = arith.constant 0 : index
    %3 = vector.load %arg5[%c0, %c0_1] : memref<128x128xf32, #tpu.memory_space<vmem>>, vector<128x128xf32>
    %c0_2 = arith.constant 0 : index
    %c0_3 = arith.constant 0 : index
    %4 = vector.load %arg3[%c0_2, %c0_3] : memref<128x128xf32, #tpu.memory_space<vmem>>, vector<128x128xf32>
    %c0_4 = arith.constant 0 : index
    %c0_5 = arith.constant 0 : index
    %5 = vector.load %arg4[%c0_4, %c0_5] : memref<128x128xf32, #tpu.memory_space<vmem>>, vector<128x128xf32>
    %cst = arith.constant dense<0.000000e+00> : vector<128x128xf32>
    %6 = tpu.matmul %4, %5, %cst {dimension_numbers = #tpu.dot_dimension_numbers<[1], [0], [0], [1], [0, 0, 1, 1], [], []>} : vector<128x128xf32>, vector<128x128xf32>, vector<128x128xf32> -> vector<128x128xf32>
    %7 = arith.addf %3, %6 : vector<128x128xf32>
    %c0_6 = arith.constant 0 : index
    %c0_7 = arith.constant 0 : index
    %8 = vector.load %arg5[%c0_6, %c0_7] : memref<128x128xf32, #tpu.memory_space<vmem>>, vector<128x128xf32>
    tpu.vector_store %arg5[%c0_6, %c0_7], %7 {strides = array<i32>} : memref<128x128xf32, #tpu.memory_space<vmem>>, vector<128x128xf32>,
    return
  }
  func.func @transform_0(%arg0: i32, %arg1: i32, %arg2: i32) -> (i32, i32) {
    %c0_i32 = arith.constant 0 : i32
    return %arg0, %arg2 : i32, i32
  }
  func.func @transform_1(%arg0: i32, %arg1: i32, %arg2: i32) -> (i32, i32) {
    %c0_i32 = arith.constant 0 : i32
    return %arg2, %arg1 : i32, i32
  }
  func.func @transform_2(%arg0: i32, %arg1: i32, %arg2: i32) -> (i32, i32) {
    %c0_i32 = arith.constant 0 : i32
    return %arg0, %arg1 : i32, i32
  }
}

</mosaic_0001>

<llo_original>
// kernel: tpu_custom_call.1
$region0: #{tpu_custom_call.1}
  #allocation0 [shape = 'u32[]', space=smem, size = 0x4, offset = 0x4, fixed_abs, tag = 'smem constant byte address 0x4 - core index']
  #allocation1 [shape = 'u32[72,128]{1,0:T(1,128)}', space=vmem, size = 0x9000, scoped, tag = 'internal scratch']
  %s0 = inlined_call_operand.hbm [shape: f32[128,128], index: 0, kind: input, shape index: {}]
  %s1 = inlined_call_operand.hbm [shape: f32[128,128], index: 1, kind: input, shape index: {}]
  %s2 = inlined_call_operand.hbm [shape: f32[128,128], index: 2, kind: output, shape index: {}]
  %s3 = sld [smem:[#allocation0]]
  $region30: #{tpu_custom_call.1} parent=0
    _
  %s5 = ssub.s32 1, %s3
  %s6 = scalar_select 0, %s5, %s3
  $region1: #{tpu_custom_call.1} parent=0
    #allocation2 [shape = 'u8[65536]{0}', space=vmem, size = 0x10000, scoped, tag = 'input window, operand 0, single buffered']
    #allocation3 [shape = 's32[1]{0}', space=sflag, size = 0x4, scoped, tag = 'scoped memory for tpu_custom_call.1']
    #allocation4 [shape = 's32[1]{0}', space=sflag, size = 0x4, scoped, tag = 'scoped memory for tpu_custom_call.1']
    #allocation5 [shape = 'u8[65536]{0}', space=vmem, size = 0x10000, scoped, tag = 'input window, operand 1, single buffered']
    #allocation6 [shape = 's32[1]{0}', space=sflag, size = 0x4, scoped, tag = 'scoped memory for tpu_custom_call.1']
    #allocation7 [shape = 'u8[65536]{0}', space=vmem, size = 0x10000, scoped, tag = 'output window, operand 0, single buffered']
    %7 = vsyncpa [#allocation3], 0
    %8 = vsyncpa [#allocation6], 0
    %9 = vsyncpa [#allocation4], 0
    // Predicated region
    $region2: #{tpu_custom_call.1} parent=1 // pred_check
      _
    $region3: #{tpu_custom_call.1} parent=1 // pred_check_branch
      %11 = sbr.rel (0) target = $region5
    $region4: #{tpu_custom_call.1} parent=1 // pred_region
      %13 = vsyncadd [#allocation3], 0
      %s14 = sshll.u32 %s0, 4
      %s15 = int_to_ptr.hbm [resolvable:$true] %s14
      %s16 = sshll.u32 [#allocation2], 4
      %s17 = int_to_ptr.vmem [resolvable:$true] %s16
      %22 = dma.hbm_to_vmem [thread:$0]  %s15, 2048, %s17, [#allocation3], 128, 128, 8
    $region5: #{tpu_custom_call.1} parent=1 // pred_fallthru
      _
    // Predicated region
    $region6: #{tpu_custom_call.1} parent=1 // pred_check
      _
    $region7: #{tpu_custom_call.1} parent=1 // pred_check_branch
      %24 = sbr.rel (0) target = $region9
    $region8: #{tpu_custom_call.1} parent=1 // pred_region
      %26 = vsyncadd [#allocation6], 0
      %s27 = sshll.u32 %s1, 4
      %s28 = int_to_ptr.hbm [resolvable:$true] %s27
      %s29 = sshll.u32 [#allocation5], 4
      %s30 = int_to_ptr.vmem [resolvable:$true] %s29
      %35 = dma.hbm_to_vmem [thread:$0]  %s28, 2048, %s30, [#allocation6], 128, 128, 8
    $region9: #{tpu_custom_call.1} parent=1 // pred_fallthru
      _
    // Predicated region
    $region10: #{tpu_custom_call.1} parent=1 // pred_check
      _
    $region11: #{tpu_custom_call.1} parent=1 // pred_check_branch
      %37 = sbr.rel (0) target = $region13
    $region12: #{tpu_custom_call.1} parent=1 // pred_region
      %39 = dma.done [#allocation3], 2048
    $region13: #{tpu_custom_call.1} parent=1 // pred_fallthru
      _
    // Predicated region
    $region14: #{tpu_custom_call.1} parent=1 // pred_check
      _
    $region15: #{tpu_custom_call.1} parent=1 // pred_check_branch
      %41 = sbr.rel (0) target = $region17
    $region16: #{tpu_custom_call.1} parent=1 // pred_region
      %43 = dma.done [#allocation6], 2048
    $region17: #{tpu_custom_call.1} parent=1 // pred_fallthru
      _
    %p44 = scmp.eq.s32.totalorder 0, 0
    // Predicated region
    $region18: #{tpu_custom_call.1} parent=1 // pred_check
      %p45 = pneg %p44
    $region19: #{tpu_custom_call.1} parent=1 // pred_check_branch
      %47 = sbr.rel (%p45) target = $region21
    $region20: #{tpu_custom_call.1} parent=1 // pred_region
      %48 = vst [vmem:[#allocation7] sm:$0xff] 0.0
      %49 = vst [vmem:[#allocation7 + $0x8] sm:$0xff] 0.0
      %50 = vst [vmem:[#allocation7 + $0x10] sm:$0xff] 0.0
      %51 = vst [vmem:[#allocation7 + $0x18] sm:$0xff] 0.0
      %52 = vst [vmem:[#allocation7 + $0x20] sm:$0xff] 0.0
      %53 = vst [vmem:[#allocation7 + $0x28] sm:$0xff] 0.0
      %54 = vst [vmem:[#allocation7 + $0x30] sm:$0xff] 0.0
      %55 = vst [vmem:[#allocation7 + $0x38] sm:$0xff] 0.0
      %56 = vst [vmem:[#allocation7 + $0x40] sm:$0xff] 0.0
      %57 = vst [vmem:[#allocation7 + $0x48] sm:$0xff] 0.0
      %58 = vst [vmem:[#allocation7 + $0x50] sm:$0xff] 0.0
      %59 = vst [vmem:[#allocation7 + $0x58] sm:$0xff] 0.0
      %60 = vst [vmem:[#allocation7 + $0x60] sm:$0xff] 0.0
      %61 = vst [vmem:[#allocation7 + $0x68] sm:$0xff] 0.0
      %62 = vst [vmem:[#allocation7 + $0x70] sm:$0xff] 0.0
      %63 = vst [vmem:[#allocation7 + $0x78] sm:$0xff] 0.0
    $region21: #{tpu_custom_call.1} parent=1 // pred_fallthru
      _
    %v64 = vld [vmem:[#allocation7] sm:$0xff]
    %v65 = vld [vmem:[#allocation7 + $0x8] sm:$0xff]
    %v66 = vld [vmem:[#allocation7 + $0x10] sm:$0xff]
    %v67 = vld [vmem:[#allocation7 + $0x18] sm:$0xff]
    %v68 = vld [vmem:[#allocation7 + $0x20] sm:$0xff]
    %v69 = vld [vmem:[#allocation7 + $0x28] sm:$0xff]
    %v70 = vld [vmem:[#allocation7 + $0x30] sm:$0xff]
    %v71 = vld [vmem:[#allocation7 + $0x38] sm:$0xff]
    %v72 = vld [vmem:[#allocation7 + $0x40] sm:$0xff]
    %v73 = vld [vmem:[#allocation7 + $0x48] sm:$0xff]
    %v74 = vld [vmem:[#allocation7 + $0x50] sm:$0xff]
    %v75 = vld [vmem:[#allocation7 + $0x58] sm:$0xff]
    %v76 = vld [vmem:[#allocation7 + $0x60] sm:$0xff]
    %v77 = vld [vmem:[#allocation7 + $0x68] sm:$0xff]
    %v78 = vld [vmem:[#allocation7 + $0x70] sm:$0xff]
    %v79 = vld [vmem:[#allocation7 + $0x78] sm:$0xff]
    %v80 = vld [vmem:[#allocation2] sm:$0xff]
    %v81 = vld [vmem:[#allocation2 + $0x8] sm:$0xff]
    %v82 = vld [vmem:[#allocation2 + $0x10] sm:$0xff]
    %v83 = vld [vmem:[#allocation2 + $0x18] sm:$0xff]
    %v84 = vld [vmem:[#allocation2 + $0x20] sm:$0xff]
    %v85 = vld [vmem:[#allocation2 + $0x28] sm:$0xff]
    %v86 = vld [vmem:[#allocation2 + $0x30] sm:$0xff]
    %v87 = vld [vmem:[#allocation2 + $0x38] sm:$0xff]
    %v88 = vld [vmem:[#allocation2 + $0x40] sm:$0xff]
    %v89 = vld [vmem:[#allocation2 + $0x48] sm:$0xff]
    %v90 = vld [vmem:[#allocation2 + $0x50] sm:$0xff]
    %v91 = vld [vmem:[#allocation2 + $0x58] sm:$0xff]
    %v92 = vld [vmem:[#allocation2 + $0x60] sm:$0xff]
    %v93 = vld [vmem:[#allocation2 + $0x68] sm:$0xff]
    %v94 = vld [vmem:[#allocation2 + $0x70] sm:$0xff]
    %v95 = vld [vmem:[#allocation2 + $0x78] sm:$0xff]
    %v96 = vld [vmem:[#allocation5] sm:$0xff]
    %v97 = vld [vmem:[#allocation5 + $0x8] sm:$0xff]
    %v98 = vld [vmem:[#allocation5 + $0x10] sm:$0xff]
    %v99 = vld [vmem:[#allocation5 + $0x18] sm:$0xff]
    %v100 = vld [vmem:[#allocation5 + $0x20] sm:$0xff]
    %v101 = vld [vmem:[#allocation5 + $0x28] sm:$0xff]
    %v102 = vld [vmem:[#allocation5 + $0x30] sm:$0xff]
    %v103 = vld [vmem:[#allocation5 + $0x38] sm:$0xff]
    %v104 = vld [vmem:[#allocation5 + $0x40] sm:$0xff]
    %v105 = vld [vmem:[#allocation5 + $0x48] sm:$0xff]
    %v106 = vld [vmem:[#allocation5 + $0x50] sm:$0xff]
    %v107 = vld [vmem:[#allocation5 + $0x58] sm:$0xff]
    %v108 = vld [vmem:[#allocation5 + $0x60] sm:$0xff]
    %v109 = vld [vmem:[#allocation5 + $0x68] sm:$0xff]
    %v110 = vld [vmem:[#allocation5 + $0x70] sm:$0xff]
    %v111 = vld [vmem:[#allocation5 + $0x78] sm:$0xff]
    %112 = vmatpush.msra.mxu0 %v111
    %113 = vmatpush.msra.mxu0 %v110
    %114 = vmatpush.msra.mxu0 %v109
    %115 = vmatpush.msra.mxu0 %v108
    %116 = vmatpush.msra.mxu0 %v107
    %117 = vmatpush.msra.mxu0 %v106
    %118 = vmatpush.msra.mxu0 %v105
    %119 = vmatpush.msra.mxu0 %v104
    %120 = vmatpush.msra.mxu0 %v103
    %121 = vmatpush.msra.mxu0 %v102
    %122 = vmatpush.msra.mxu0 %v101
    %123 = vmatpush.msra.mxu0 %v100
    %124 = vmatpush.msra.mxu0 %v99
    %125 = vmatpush.msra.mxu0 %v98
    %126 = vmatpush.msra.mxu0 %v97
    %127 = vmatpush.msra.mxu0 %v96
    %128 = vmatmul.f32.gmra.mxu0 %v80
    %v129 = vpop.f32.mrf.mxu0
    %v130 = vadd.f32 0.0, %v129
    %131 = vmatmul.f32.gmra.mxu0 %v81
    %v132 = vpop.f32.mrf.mxu0
    %v133 = vadd.f32 0.0, %v132
    %134 = vmatmul.f32.gmra.mxu0 %v82
    %v135 = vpop.f32.mrf.mxu0
    %v136 = vadd.f32 0.0, %v135
    %137 = vmatmul.f32.gmra.mxu0 %v83
    %v138 = vpop.f32.mrf.mxu0
    %v139 = vadd.f32 0.0, %v138
    %140 = vmatmul.f32.gmra.mxu0 %v84
    %v141 = vpop.f32.mrf.mxu0
    %v142 = vadd.f32 0.0, %v141
    %143 = vmatmul.f32.gmra.mxu0 %v85
    %v144 = vpop.f32.mrf.mxu0
    %v145 = vadd.f32 0.0, %v144
    %146 = vmatmul.f32.gmra.mxu0 %v86
    %v147 = vpop.f32.mrf.mxu0
    %v148 = vadd.f32 0.0, %v147
    %149 = vmatmul.f32.gmra.mxu0 %v87
    %v150 = vpop.f32.mrf.mxu0
    %v151 = vadd.f32 0.0, %v150
    %152 = vmatmul.f32.gmra.mxu0 %v88
    %v153 = vpop.f32.mrf.mxu0
    %v154 = vadd.f32 0.0, %v153
    %155 = vmatmul.f32.gmra.mxu0 %v89
    %v156 = vpop.f32.mrf.mxu0
    %v157 = vadd.f32 0.0, %v156
    %158 = vmatmul.f32.gmra.mxu0 %v90
    %v159 = vpop.f32.mrf.mxu0
    %v160 = vadd.f32 0.0, %v159
    %161 = vmatmul.f32.gmra.mxu0 %v91
    %v162 = vpop.f32.mrf.mxu0
    %v163 = vadd.f32 0.0, %v162
    %164 = vmatmul.f32.gmra.mxu0 %v92
    %v165 = vpop.f32.mrf.mxu0
    %v166 = vadd.f32 0.0, %v165
    %167 = vmatmul.f32.gmra.mxu0 %v93
    %v168 = vpop.f32.mrf.mxu0
    %v169 = vadd.f32 0.0, %v168
    %170 = vmatmul.f32.gmra.mxu0 %v94
    %v171 = vpop.f32.mrf.mxu0
    %v172 = vadd.f32 0.0, %v171
    %173 = vmatmul.f32.gmra.mxu0 %v95
    %v174 = vpop.f32.mrf.mxu0
    %v175 = vadd.f32 0.0, %v174
    %176 = vdwg.mxu0
    %v177 = vadd.f32 %v64, %v130
    %v178 = vadd.f32 %v65, %v133
    %v179 = vadd.f32 %v66, %v136
    %v180 = vadd.f32 %v67, %v139
    %v181 = vadd.f32 %v68, %v142
    %v182 = vadd.f32 %v69, %v145
    %v183 = vadd.f32 %v70, %v148
    %v184 = vadd.f32 %v71, %v151
    %v185 = vadd.f32 %v72, %v154
    %v186 = vadd.f32 %v73, %v157
    %v187 = vadd.f32 %v74, %v160
    %v188 = vadd.f32 %v75, %v163
    %v189 = vadd.f32 %v76, %v166
    %v190 = vadd.f32 %v77, %v169
    %v191 = vadd.f32 %v78, %v172
    %v192 = vadd.f32 %v79, %v175
    %193 = vst [vmem:[#allocation7] sm:$0xff] %v177
    %194 = vst [vmem:[#allocation7 + $0x8] sm:$0xff] %v178
    %195 = vst [vmem:[#allocation7 + $0x10] sm:$0xff] %v179
    %196 = vst [vmem:[#allocation7 + $0x18] sm:$0xff] %v180
    %197 = vst [vmem:[#allocation7 + $0x20] sm:$0xff] %v181
    %198 = vst [vmem:[#allocation7 + $0x28] sm:$0xff] %v182
    %199 = vst [vmem:[#allocation7 + $0x30] sm:$0xff] %v183
    %200 = vst [vmem:[#allocation7 + $0x38] sm:$0xff] %v184
    %201 = vst [vmem:[#allocation7 + $0x40] sm:$0xff] %v185
    %202 = vst [vmem:[#allocation7 + $0x48] sm:$0xff] %v186
    %203 = vst [vmem:[#allocation7 + $0x50] sm:$0xff] %v187
    %204 = vst [vmem:[#allocation7 + $0x58] sm:$0xff] %v188
    %205 = vst [vmem:[#allocation7 + $0x60] sm:$0xff] %v189
    %206 = vst [vmem:[#allocation7 + $0x68] sm:$0xff] %v190
    %207 = vst [vmem:[#allocation7 + $0x70] sm:$0xff] %v191
    %208 = vst [vmem:[#allocation7 + $0x78] sm:$0xff] %v192
    // Predicated region
    $region22: #{tpu_custom_call.1} parent=1 // pred_check
      _
    $region23: #{tpu_custom_call.1} parent=1 // pred_check_branch
      %210 = sbr.rel (0) target = $region25
    $region24: #{tpu_custom_call.1} parent=1 // pred_region
      %212 = vsyncadd [#allocation4], 0
      %s213 = sshll.u32 [#allocation7], 4
      %s214 = int_to_ptr.vmem [resolvable:$true] %s213
      %s215 = sshll.u32 %s2, 4
      %s216 = int_to_ptr.hbm [resolvable:$true] %s215
      %221 = dma.vmem_to_hbm [thread:$0]  %s214, 2048, %s216, [#allocation4], 128, 128, 8
    $region25: #{tpu_custom_call.1} parent=1 // pred_fallthru
      _
    // Predicated region
    $region26: #{tpu_custom_call.1} parent=1 // pred_check
      _
    $region27: #{tpu_custom_call.1} parent=1 // pred_check_branch
      %223 = sbr.rel (0) target = $region29
    $region28: #{tpu_custom_call.1} parent=1 // pred_region
      %225 = dma.done [#allocation4], 2048
    $region29: #{tpu_custom_call.1} parent=1 // pred_fallthru
      _
    %226 = vsyncpa [#allocation3], 1
    %227 = vsyncpa [#allocation6], 1
    %228 = vsyncpa [#allocation4], 1

</llo_original>
